<compile_context>
chip_gen: v5e
topology: v5e:2x2
jax: 0.10.0
libtpu: 0.0.40
codegen_flags: <defaults>
</compile_context>

<pallas_src>
import jax
import jax.numpy as jnp
from jax.experimental import pallas as pl
from jax.experimental.pallas import tpu as pltpu  # noqa: F401  (TPU backend parity)

# ---- static configuration (small, consistent with the module) ---------------
DIM = 64
BATCH = 2

# bf16 MXU operands, f32 accumulation (perf feedback #1). v5e/v6e/v7x all take
# bf16 natively on the MXU; elementwise math below stays f32.
MXU_DTYPE = jnp.bfloat16


# ---------------------------- Pallas kernel ----------------------------------
def modulation_kernel(vec_ref, w_ref, b_ref, out_ref):
    """out = silu(vec) @ W + b  (one MXU matmul, f32 accumulate)."""
    v = vec_ref[...]                                    # (B, dim) f32
    silu = v * jax.nn.sigmoid(v)                        # f32 VPU + EUP (v5e-safe)
    acc = jnp.dot(silu.astype(MXU_DTYPE), w_ref[...],
                  preferred_element_type=jnp.float32)   # (B, mult*dim) f32 acc
    out_ref[...] = acc + b_ref[...]                     # bias broadcast over rows


# ------------------------------ wrapper ---------------------------------------
def modulation_forward(vec, W_bf16, b_row, double):
    """Pallas-backed Modulation.forward.

    vec:     (B, dim)            f32
    W_bf16:  (dim, mult*dim)     bf16 (cast once outside the per-call path)
    b_row:   (1, mult*dim)       f32
    Returns ((shift, scale, gate), (shift2, scale2, gate2) | None); each chunk
    has shape (B, 1, dim), matching the PyTorch module's `out[:, None, :]`.
    """
    B, dim = vec.shape
    out_dim = W_bf16.shape[1]
    mult = out_dim // dim

    out = pl.pallas_call(
        modulation_kernel,
        out_shape=jax.ShapeDtypeStruct((B, out_dim), jnp.float32),
        # single gridless launch: all operands (~100 KB) resident in VMEM,
        # output slab is lane-dense (mult*dim = 384 or 192 lanes)
    )(vec, W_bf16, b_row)

    out = out[:, None, :]                               # (B, 1, mult*dim)
    chunks = jnp.split(out, mult, axis=-1)              # mult x (B, 1, dim)
    first = tuple(chunks[:3])
    second = tuple(chunks[3:]) if double else None
    return first, second


# ------------------------- pure-JAX reference ---------------------------------
def ref_forward(vec, W, b, double):
    mult = W.shape[1] // vec.shape[1]
    silu = vec * jax.nn.sigmoid(vec)
    out = (silu @ W + b)[:, None, :]
    chunks = jnp.split(out, mult, axis=-1)
    return tuple(chunks[:3]), (tuple(chunks[3:]) if double else None)


def _check(name, got, want, atol=5e-3, rtol=5e-3):
    # tolerance sized for bf16 MXU operands (f32 accumulation), per feedback.
    if not jnp.allclose(got, want, atol=atol, rtol=rtol):
        err = float(jnp.max(jnp.abs(got - want)))
        raise AssertionError(f"{name}: Pallas vs reference mismatch, max abs err = {err}")


# --------------------------------- main ----------------------------------------
if __name__ == "__main__":
    key = jax.random.PRNGKey(0)

    for double in (True, False):
        mult = 6 if double else 3
        k0, k1, k2, key = jax.random.split(key, 4)
        vec = jax.random.normal(k0, (BATCH, DIM), jnp.float32)
        W = 0.05 * jax.random.normal(k1, (DIM, mult * DIM), jnp.float32)
        b = 0.05 * jax.random.normal(k2, (mult * DIM,), jnp.float32)

        # parameter prep hoisted out of the per-call path (review note):
        W_bf16 = W.astype(MXU_DTYPE)
        b_row = b[None, :]

        first, second = modulation_forward(vec, W_bf16, b_row, double)
        first = jax.block_until_ready(first)

        ref_first, ref_second = ref_forward(vec, W, b, double)
        for name, got, want in zip(("shift", "scale", "gate"), first, ref_first):
            _check(f"double={double} {name}", got, want)
        if double:
            second = jax.block_until_ready(second)
            for name, got, want in zip(("shift2", "scale2", "gate2"), second, ref_second):
                _check(f"double={double} {name}", got, want)
        else:
            assert second is None

    print("KERNEL_OK")
</pallas_src>

<mosaic_0001>
module attributes {stable_mosaic.version = 11 : i64} {
  func.func @modulation_kernel(%arg0: memref<2x64xf32, #tpu.memory_space<vmem>>, %arg1: memref<64x384xbf16, #tpu.memory_space<vmem>>, %arg2: memref<1x384xf32, #tpu.memory_space<vmem>>, %arg3: memref<2x384xf32, #tpu.memory_space<vmem>>) attributes {dimension_semantics = [], scalar_prefetch = 0 : i64, scratch_operands = 0 : i64, tpu.core_type = #tpu.core_type<tc>} {
    %c0 = arith.constant 0 : index
    %c0_0 = arith.constant 0 : index
    %0 = vector.load %arg0[%c0, %c0_0] : memref<2x64xf32, #tpu.memory_space<vmem>>, vector<2x64xf32>
    %1 = arith.negf %0 : vector<2x64xf32>
    %2 = math.exp %1 : vector<2x64xf32>
    %cst = arith.constant 1.000000e+00 : f32
    %3 = vector.broadcast %cst : f32 to vector<2x64xf32>
    %4 = arith.addf %3, %2 : vector<2x64xf32>
    %5 = arith.divf %3, %4 : vector<2x64xf32>
    %6 = arith.mulf %0, %5 : vector<2x64xf32>
    %7 = arith.truncf %6 : vector<2x64xf32> to vector<2x64xbf16>
    %c0_1 = arith.constant 0 : index
    %c0_2 = arith.constant 0 : index
    %8 = vector.load %arg1[%c0_1, %c0_2] : memref<64x384xbf16, #tpu.memory_space<vmem>>, vector<64x384xbf16>
    %cst_3 = arith.constant dense<0.000000e+00> : vector<2x384xf32>
    %9 = tpu.matmul %7, %8, %cst_3 {dimension_numbers = #tpu.dot_dimension_numbers<[1], [0], [0], [1], [0, 0, 1, 1], [], []>} : vector<2x64xbf16>, vector<64x384xbf16>, vector<2x384xf32> -> vector<2x384xf32>
    %c0_4 = arith.constant 0 : index
    %c0_5 = arith.constant 0 : index
    %10 = vector.load %arg2[%c0_4, %c0_5] : memref<1x384xf32, #tpu.memory_space<vmem>>, vector<1x384xf32>
    %11 = vector.broadcast %10 : vector<1x384xf32> to vector<2x384xf32>
    %12 = arith.addf %9, %11 : vector<2x384xf32>
    %c0_6 = arith.constant 0 : index
    %c0_7 = arith.constant 0 : index
    %13 = vector.load %arg3[%c0_6, %c0_7] : memref<2x384xf32, #tpu.memory_space<vmem>>, vector<2x384xf32>
    tpu.vector_store %arg3[%c0_6, %c0_7], %12 {strides = array<i32>} : memref<2x384xf32, #tpu.memory_space<vmem>>, vector<2x384xf32>,
    return
  }
}

</mosaic_0001>

<llo_original>
// kernel: tpu_custom_call.1
$region0: #{tpu_custom_call.1}
  #allocation0 [shape = 'u32[]', space=smem, size = 0x4, offset = 0x4, fixed_abs, tag = 'smem constant byte address 0x4 - core index']
  #allocation1 [shape = 'u32[72,128]{1,0:T(1,128)}', space=vmem, size = 0x9000, scoped, tag = 'internal scratch']
  %s0 = inlined_call_operand.hbm [shape: f32[2,64], index: 0, kind: input, shape index: {}]
  %s1 = inlined_call_operand.hbm [shape: bf16[64,384], index: 1, kind: input, shape index: {}]
  %s2 = inlined_call_operand.hbm [shape: f32[1,384], index: 2, kind: input, shape index: {}]
  %s3 = inlined_call_operand.hbm [shape: f32[2,384], index: 3, kind: output, shape index: {}]
  %s4 = sld [smem:[#allocation0]]
  $region34: #{tpu_custom_call.1} parent=0
    _
  %s6 = ssub.s32 1, %s4
  %s7 = scalar_select 0, %s6, %s4
  $region1: #{tpu_custom_call.1} parent=0
    #allocation2 [shape = 'u8[1024]{0}', space=vmem, size = 0x400, scoped, tag = 'input window, operand 0, single buffered']
    #allocation3 [shape = 's32[1]{0}', space=sflag, size = 0x4, scoped, tag = 'scoped memory for tpu_custom_call.1']
    #allocation4 [shape = 's32[1]{0}', space=sflag, size = 0x4, scoped, tag = 'scoped memory for tpu_custom_call.1']
    #allocation5 [shape = 'u8[49152]{0}', space=vmem, size = 0xc000, scoped, tag = 'input window, operand 1, single buffered']
    #allocation6 [shape = 's32[1]{0}', space=sflag, size = 0x4, scoped, tag = 'scoped memory for tpu_custom_call.1']
    #allocation7 [shape = 'u8[1536]{0}', space=vmem, size = 0x800, scoped, tag = 'input window, operand 2, single buffered']
    #allocation8 [shape = 'u8[3072]{0}', space=vmem, size = 0xc00, scoped, tag = 'output window, operand 0, single buffered']
    %8 = vsyncpa [#allocation3], 0
    %9 = vsyncpa [#allocation6], 0
    %10 = vsyncpa [#allocation4], 0
    // Predicated region
    $region2: #{tpu_custom_call.1} parent=1 // pred_check
      _
    $region3: #{tpu_custom_call.1} parent=1 // pred_check_branch
      %12 = sbr.rel (0) target = $region5
    $region4: #{tpu_custom_call.1} parent=1 // pred_region
      %14 = vsyncadd [#allocation3], 0
      %s16 = sshll.u32 %s0, 4
      %s17 = int_to_ptr.hbm [resolvable:$true] %s16
      %s18 = sshll.u32 [#allocation2], 4
      %s19 = int_to_ptr.vmem [resolvable:$true] %s18
      %21 = dma.hbm_to_vmem [thread:$0]  %s17, 32, %s19, [#allocation3]
    $region5: #{tpu_custom_call.1} parent=1 // pred_fallthru
      _
    // Predicated region
    $region6: #{tpu_custom_call.1} parent=1 // pred_check
      _
    $region7: #{tpu_custom_call.1} parent=1 // pred_check_branch
      %23 = sbr.rel (0) target = $region9
    $region8: #{tpu_custom_call.1} parent=1 // pred_region
      %25 = vsyncadd [#allocation6], 0
      %s26 = sshll.u32 %s1, 4
      %s27 = int_to_ptr.hbm [resolvable:$true] %s26
      %s28 = sshll.u32 [#allocation5], 4
      %s29 = int_to_ptr.vmem [resolvable:$true] %s28
      %34 = dma.hbm_to_vmem [thread:$0]  %s27, 1536, %s29, [#allocation6], 192, 192, 12
    $region9: #{tpu_custom_call.1} parent=1 // pred_fallthru
      _
    // Predicated region
    $region10: #{tpu_custom_call.1} parent=1 // pred_check
      _
    $region11: #{tpu_custom_call.1} parent=1 // pred_check_branch
      %36 = sbr.rel (0) target = $region13
    $region12: #{tpu_custom_call.1} parent=1 // pred_region
      %38 = vsyncadd [#allocation6], 0
      %s40 = sshll.u32 %s2, 4
      %s41 = int_to_ptr.hbm [resolvable:$true] %s40
      %s42 = sshll.u32 [#allocation7], 4
      %s43 = int_to_ptr.vmem [resolvable:$true] %s42
      %45 = dma.hbm_to_vmem [thread:$0]  %s41, 48, %s43, [#allocation6]
    $region13: #{tpu_custom_call.1} parent=1 // pred_fallthru
      _
    // Predicated region
    $region14: #{tpu_custom_call.1} parent=1 // pred_check
      _
    $region15: #{tpu_custom_call.1} parent=1 // pred_check_branch
      %47 = sbr.rel (0) target = $region17
    $region16: #{tpu_custom_call.1} parent=1 // pred_region
      %49 = dma.done [#allocation3], 32
    $region17: #{tpu_custom_call.1} parent=1 // pred_fallthru
      _
    // Predicated region
    $region18: #{tpu_custom_call.1} parent=1 // pred_check
      _
    $region19: #{tpu_custom_call.1} parent=1 // pred_check_branch
      %51 = sbr.rel (0) target = $region21
    $region20: #{tpu_custom_call.1} parent=1 // pred_region
      %53 = dma.done [#allocation6], 1536
    $region21: #{tpu_custom_call.1} parent=1 // pred_fallthru
      _
    // Predicated region
    $region22: #{tpu_custom_call.1} parent=1 // pred_check
      _
    $region23: #{tpu_custom_call.1} parent=1 // pred_check_branch
      %55 = sbr.rel (0) target = $region25
    $region24: #{tpu_custom_call.1} parent=1 // pred_region
      %57 = dma.done [#allocation6], 48
    $region25: #{tpu_custom_call.1} parent=1 // pred_fallthru
      _
    %v59 = vld [vmem:[#allocation2] sm:$0x3]
    %v60 = vxor.u32 %v59, 2147483648
    %v61 = vmul.f32 %v60, 1.442695
    %v62 = vpow.pop %v61
    %v63 = vadd.f32 %v62, 1.0
    %v64 = vrcp.pop %v63
    %v65 = vmul.f32 %v63, %v64
    %v66 = vsub.f32 1.0, %v65
    %v67 = vmul.f32 %v64, %v66
    %v68 = vadd.f32 %v64, %v67
    %vm69 = vweird.f32 %v63
    %vm70 = vweird.f32 %v64
    %vm71 = vmor %vm69, %vm70
    %v72 = vsel %vm71, %v64, %v68
    %v73 = vand.u32 2147483647, %v63
    %vm74 = vcmp.eq.f32.partialorder %v73, 8.507059e+37
    %v75 = vand.u32 %v63, 2147483648
    %v76 = vor.u32 1.1754944e-38, %v75
    %v77 = vsel %vm74, %v76, %v72
    %v78 = vmul.f32 1.0, %v77
    %v79 = vmul.f32 %v59, %v78
    %v80 = vpack.c.bf16 %v79, %v79
    %v81 = vld [vmem:[#allocation5] sm:$0xff]
    %v82 = vld [vmem:[#allocation5 + $0x8] sm:$0xf]
    %v83 = vld [vmem:[#allocation5 + $0xc] sm:$0xff]
    %v84 = vld [vmem:[#allocation5 + $0x14] sm:$0xf]
    %v85 = vld [vmem:[#allocation5 + $0x18] sm:$0xff]
    %v86 = vld [vmem:[#allocation5 + $0x20] sm:$0xf]
    %v87 = vld [vmem:[#allocation5 + $0x24] sm:$0xff]
    %v88 = vld [vmem:[#allocation5 + $0x2c] sm:$0xf]
    %v89 = vld [vmem:[#allocation5 + $0x30] sm:$0xff]
    %v90 = vld [vmem:[#allocation5 + $0x38] sm:$0xf]
    %v91 = vld [vmem:[#allocation5 + $0x3c] sm:$0xff]
    %v92 = vld [vmem:[#allocation5 + $0x44] sm:$0xf]
    %v93 = vld [vmem:[#allocation5 + $0x48] sm:$0xff]
    %v94 = vld [vmem:[#allocation5 + $0x50] sm:$0xf]
    %v95 = vld [vmem:[#allocation5 + $0x54] sm:$0xff]
    %v96 = vld [vmem:[#allocation5 + $0x5c] sm:$0xf]
    %v97 = vld [vmem:[#allocation7] sm:$0x7]
    %v99 = vperm.slane %v97, 0
    %v100 = vperm.slane %v97, 1
    %v101 = vperm.slane %v97, 2
    %v121 = vunpack.c.l.b16 %v81
    %v122 = vunpack.c.h.b16 %v81
    %v123 = vunpack.c.l.b16 %v82
    %v124 = vunpack.c.l.b16 %v83
    %v125 = vunpack.c.h.b16 %v83
    %v126 = vunpack.c.l.b16 %v84
    %v127 = vunpack.c.l.b16 %v85
    %v128 = vunpack.c.h.b16 %v85
    %v129 = vunpack.c.l.b16 %v86
    %v130 = vunpack.c.l.b16 %v87
    %v131 = vunpack.c.h.b16 %v87
    %v132 = vunpack.c.l.b16 %v88
    %v133 = vunpack.c.l.b16 %v89
    %v134 = vunpack.c.h.b16 %v89
    %v135 = vunpack.c.l.b16 %v90
    %v136 = vunpack.c.l.b16 %v91
    %v137 = vunpack.c.h.b16 %v91
    %v138 = vunpack.c.l.b16 %v92
    %v139 = vunpack.c.l.b16 %v93
    %v140 = vunpack.c.h.b16 %v93
    %v141 = vunpack.c.l.b16 %v94
    %v142 = vunpack.c.l.b16 %v95
    %v143 = vunpack.c.h.b16 %v95
    %v144 = vunpack.c.l.b16 %v96
    %v145 = vpack.c.b16 %v124, %v121
    %v146 = vpack.c.b16 %v125, %v122
    %v147 = vpack.c.b16 %v126, %v123
    %v148 = vpack.c.b16 %v130, %v127
    %v149 = vpack.c.b16 %v131, %v128
    %v150 = vpack.c.b16 %v132, %v129
    %v151 = vpack.c.b16 %v136, %v133
    %v152 = vpack.c.b16 %v137, %v134
    %v153 = vpack.c.b16 %v138, %v135
    %v154 = vpack.c.b16 %v142, %v139
    %v155 = vpack.c.b16 %v143, %v140
    %v156 = vpack.c.b16 %v144, %v141
    %vm169 = vcmask 523264
    %v171 = vsel %vm169, %v80, 0
    %173 = vmatpush.bf16.msra.mxu0 0
    %174 = vmatpush.bf16.msra.mxu0 0
    %175 = vmatpush.bf16.msra.mxu0 0
    %176 = vmatpush.bf16.msra.mxu0 0
    %177 = vmatpush.bf16.msra.mxu0 %v154
    %178 = vmatpush.bf16.msra.mxu0 %v151
    %179 = vmatpush.bf16.msra.mxu0 %v148
    %180 = vmatpush.bf16.msra.mxu0 %v145
    %181 = vmatmul.bf16.gmra.mxu0 %v171
    %v182 = vpop.f32.mrf.mxu0
    %v183 = vadd.f32 %v99, %v182
    %v184 = vpop.f32.mrf.mxu0
    %185 = vdwg.mxu0
    %186 = vmatpush.bf16.msra.mxu0 0
    %187 = vmatpush.bf16.msra.mxu0 0
    %188 = vmatpush.bf16.msra.mxu0 0
    %189 = vmatpush.bf16.msra.mxu0 0
    %190 = vmatpush.bf16.msra.mxu0 %v155
    %191 = vmatpush.bf16.msra.mxu0 %v152
    %192 = vmatpush.bf16.msra.mxu0 %v149
    %193 = vmatpush.bf16.msra.mxu0 %v146
    %194 = vmatmul.bf16.gmra.mxu0 %v171
    %v195 = vpop.f32.mrf.mxu0
    %v196 = vadd.f32 %v100, %v195
    %v197 = vpop.f32.mrf.mxu0
    %198 = vdwg.mxu0
    %199 = vmatpush.bf16.msra.mxu0 0
    %200 = vmatpush.bf16.msra.mxu0 0
    %201 = vmatpush.bf16.msra.mxu0 0
    %202 = vmatpush.bf16.msra.mxu0 0
    %203 = vmatpush.bf16.msra.mxu0 %v156
    %204 = vmatpush.bf16.msra.mxu0 %v153
    %205 = vmatpush.bf16.msra.mxu0 %v150
    %206 = vmatpush.bf16.msra.mxu0 %v147
    %207 = vmatmul.bf16.gmra.mxu0 %v171
    %v208 = vpop.f32.mrf.mxu0
    %v209 = vadd.f32 %v101, %v208
    %v210 = vpop.f32.mrf.mxu0
    %211 = vdwg.mxu0
    %v215 = vrot.slane %v196, 6
    %v216 = vrot.slane %v209, 4
    %vm217 = vcmask 1041408
    %v218 = vsel %vm217, %v183, %v215
    %vm219 = vcmask 1043456
    %v220 = vsel %vm219, %v218, %v216
    %222 = vst [vmem:[#allocation8] sm:$0x3f] %v220
    // Predicated region
    $region26: #{tpu_custom_call.1} parent=1 // pred_check
      _
    $region27: #{tpu_custom_call.1} parent=1 // pred_check_branch
      %224 = sbr.rel (0) target = $region29
    $region28: #{tpu_custom_call.1} parent=1 // pred_region
      %226 = vsyncadd [#allocation4], 0
      %s228 = sshll.u32 [#allocation8], 4
      %s229 = int_to_ptr.vmem [resolvable:$true] %s228
      %s230 = sshll.u32 %s3, 4
      %s231 = int_to_ptr.hbm [resolvable:$true] %s230
      %233 = dma.vmem_to_hbm [thread:$0]  %s229, 96, %s231, [#allocation4]
    $region29: #{tpu_custom_call.1} parent=1 // pred_fallthru
      _
    // Predicated region
    $region30: #{tpu_custom_call.1} parent=1 // pred_check
      _
    $region31: #{tpu_custom_call.1} parent=1 // pred_check_branch
      %235 = sbr.rel (0) target = $region33
    $region32: #{tpu_custom_call.1} parent=1 // pred_region
      %237 = dma.done [#allocation4], 96
    $region33: #{tpu_custom_call.1} parent=1 // pred_fallthru
      _
    %238 = vsyncpa [#allocation3], 1
    %239 = vsyncpa [#allocation6], 1
    %240 = vsyncpa [#allocation4], 1

</llo_original>
